<compile_context>
chip_gen: v7x
topology: tpu7x:2x2x1
jax: 0.10.0
libtpu: 0.0.40
codegen_flags: <defaults>
</compile_context>

<pallas_src>
import math

import jax
import jax.numpy as jnp
from jax.experimental import pallas as pl
from jax.experimental.pallas import tpu as pltpu


def _pe_add_kernel(x_ref, pe_ref, o_ref):
    # x_ref/o_ref: (B, T, D) when batch is folded into the block, or (T, D) when
    # the batch dim is a squeezed grid axis.  pe_ref: (T, D) float32.
    o_ref[...] = (x_ref[...].astype(jnp.float32) + pe_ref[...]).astype(o_ref.dtype)


def make_positional_encoding_table(d_model: int, max_seq_length: int) -> jnp.ndarray:
    """Deterministic buffer construction, identical to the PyTorch __init__ (f32)."""
    position = jnp.arange(max_seq_length, dtype=jnp.float32)[:, None]           # (L, 1)
    div_term = jnp.exp(
        jnp.arange(0, d_model, 2, dtype=jnp.float32) * -(math.log(10000.0) / d_model)
    )                                                                            # (D/2,)
    angles = position * div_term                                                 # (L, D/2)
    pe = jnp.zeros((max_seq_length, d_model), dtype=jnp.float32)
    pe = pe.at[:, 0::2].set(jnp.sin(angles))
    pe = pe.at[:, 1::2].set(jnp.cos(angles))
    return pe                                                                    # (L, D)


def _round_up(a: int, b: int) -> int:
    return -(-a // b) * b


def _vmem_budget_bytes() -> int:
    """Per-x-tile budget, generation-aware (less headroom on v7x's 64 MiB VMEM)."""
    cap = None
    try:
        cap = getattr(pltpu.get_tpu_info(), "vmem_capacity_bytes", None)
    except Exception:
        cap = None
    if cap is not None and cap >= 96 * 1024 * 1024:
        return 8 * 1024 * 1024   # v5e / v6e: 128 MiB VMEM per core -> bigger tiles
    return 4 * 1024 * 1024       # v7x (64 MiB per TC) or unknown -> conservative


def _plan_tiles(B: int, S: int, D: int, itemsize: int):
    """Returns (fold_batch, tile_r, vmem_limit_bytes)."""
    pack = max(8, 32 // itemsize)          # sublane packing: 8 f32, 16 bf16, 32 int8
    c_pad = _round_up(D, 128)              # last dim pads to 128 lanes in VMEM
    budget = _vmem_budget_bytes()
    s_pad = _round_up(S, pack)

    # Prefer folding the batch dim into the block: B fewer grid steps and the pe
    # tile is fetched exactly once per row tile.
    rows_folded = budget // (B * c_pad * itemsize)
    if rows_folded >= pack:
        fold, max_rows, bfac = True, rows_folded, B
    else:
        fold, bfac = False, 1
        max_rows = max(pack, budget // (c_pad * itemsize))

    if s_pad <= max_rows:
        tile_r = s_pad                     # one (possibly ragged) row block
    else:
        tile_r = max(pack, (max_rows // pack) * pack)

    # vmem limit from actual live bytes: x + out + pe, each double-buffered, + slack.
    x_tile = bfac * tile_r * c_pad * itemsize
    pe_tile = tile_r * c_pad * 4           # pe stays f32
    vmem_limit = 2 * (2 * x_tile + pe_tile) + 4 * 1024 * 1024
    vmem_limit = max(vmem_limit, 16 * 1024 * 1024)
    return fold, tile_r, int(vmem_limit)


def positional_encoding_forward(x: jnp.ndarray, pe: jnp.ndarray) -> jnp.ndarray:
    """x: (B, S, D); pe: (max_seq, D) float32.  Returns x + pe[:S] broadcast over batch."""
    B, S, D = x.shape
    fold, tile_r, vmem_limit = _plan_tiles(B, S, D, x.dtype.itemsize)
    row_tiles = pl.cdiv(S, tile_r)

    if fold:
        grid = (row_tiles,)
        x_spec = pl.BlockSpec((B, tile_r, D), lambda i: (0, i, 0))
        pe_spec = pl.BlockSpec((tile_r, D), lambda i: (i, 0))
        semantics = ("parallel",)
    else:
        # Batch innermost so the pe block index is constant across it (stays resident).
        grid = (row_tiles, B)
        x_spec = pl.BlockSpec((pl.Squeezed(), tile_r, D), lambda i, b: (b, i, 0))
        pe_spec = pl.BlockSpec((tile_r, D), lambda i, b: (i, 0))
        semantics = ("parallel", "parallel")

    return pl.pallas_call(
        _pe_add_kernel,
        out_shape=jax.ShapeDtypeStruct((B, S, D), x.dtype),
        grid_spec=pltpu.PrefetchScalarGridSpec(
            num_scalar_prefetch=0,
            grid=grid,
            in_specs=[x_spec, pe_spec],
            out_specs=x_spec,
        ),
        compiler_params=pltpu.CompilerParams(
            dimension_semantics=semantics,
            vmem_limit_bytes=vmem_limit,
        ),
    )(x, pe)


if __name__ == "__main__":
    key = jax.random.PRNGKey(0)
    k1, k2, k3 = jax.random.split(key, 3)

    # Case 1: spec-consistent dims (d_model=512, max_seq_length=100), small batch/seq.
    d_model, max_seq_length, batch, seq = 512, 100, 2, 8
    x1 = jax.random.normal(k1, (batch, seq, d_model), dtype=jnp.float32)
    pe1 = make_positional_encoding_table(d_model, max_seq_length)
    out1 = jax.block_until_ready(positional_encoding_forward(x1, pe1))
    ref1 = x1 + pe1[None, :seq, :]
    assert out1.shape == x1.shape
    assert jnp.allclose(out1, ref1, atol=1e-6), "mismatch vs reference (d_model=512)"

    # Case 1b: bf16 input -- add performed in f32 (matches reference numerics), cast on store.
    x1b = x1.astype(jnp.bfloat16)
    out1b = jax.block_until_ready(positional_encoding_forward(x1b, pe1))
    ref1b = (x1b.astype(jnp.float32) + pe1[None, :seq, :]).astype(jnp.bfloat16)
    assert jnp.array_equal(out1b, ref1b), "mismatch vs reference (bf16)"

    # Case 2: small d_model (<128) exercises the full-D (masked-store) last dim path.
    d_model2, max_seq2, seq2 = 32, 16, 8
    x2 = jax.random.normal(k2, (batch, seq2, d_model2), dtype=jnp.float32)
    pe2 = make_positional_encoding_table(d_model2, max_seq2)
    out2 = jax.block_until_ready(positional_encoding_forward(x2, pe2))
    ref2 = x2 + pe2[None, :seq2, :]
    assert out2.shape == x2.shape
    assert jnp.allclose(out2, ref2, atol=1e-6), "mismatch vs reference (d_model=32)"

    # Case 3: seq not a multiple of the sublane pack (ragged last block handled by Pallas).
    seq3 = 100
    x3 = jax.random.normal(k3, (batch, seq3, d_model), dtype=jnp.float32)
    out3 = jax.block_until_ready(positional_encoding_forward(x3, pe1))
    ref3 = x3 + pe1[None, :seq3, :]
    assert out3.shape == x3.shape
    assert jnp.allclose(out3, ref3, atol=1e-6), "mismatch vs reference (ragged seq=100)"

    print("KERNEL_OK")
</pallas_src>

<mosaic_0001>
module attributes {stable_mosaic.version = 11 : i64} {
  func.func @_pe_add_kernel(%arg0: i32, %arg1: memref<2x8x512xf32, #tpu.memory_space<vmem>>, %arg2: memref<8x512xf32, #tpu.memory_space<vmem>>, %arg3: memref<2x8x512xf32, #tpu.memory_space<vmem>>) attributes {dimension_semantics = [#tpu.dimension_semantics<parallel>], iteration_bounds = array<i64: 1>, scalar_prefetch = 0 : i64, scratch_operands = 0 : i64, tpu.core_type = #tpu.core_type<tc>, window_params = [{transform_indices = @transform_0, window_bounds = array<i64: 2, 8, 512>}, {transform_indices = @transform_1, window_bounds = array<i64: 8, 512>}, {transform_indices = @transform_2, window_bounds = array<i64: 2, 8, 512>}]} {
    %c0 = arith.constant 0 : index
    %c0_0 = arith.constant 0 : index
    %c0_1 = arith.constant 0 : index
    %0 = vector.load %arg1[%c0, %c0_0, %c0_1] : memref<2x8x512xf32, #tpu.memory_space<vmem>>, vector<2x8x512xf32>
    %c0_2 = arith.constant 0 : index
    %c0_3 = arith.constant 0 : index
    %1 = vector.load %arg2[%c0_2, %c0_3] : memref<8x512xf32, #tpu.memory_space<vmem>>, vector<8x512xf32>
    %2 = vector.shape_cast %1 : vector<8x512xf32> to vector<1x8x512xf32>
    %3 = vector.broadcast %2 : vector<1x8x512xf32> to vector<2x8x512xf32>
    %4 = arith.addf %0, %3 : vector<2x8x512xf32>
    %c0_4 = arith.constant 0 : index
    %c0_5 = arith.constant 0 : index
    %c0_6 = arith.constant 0 : index
    %5 = vector.load %arg3[%c0_4, %c0_5, %c0_6] : memref<2x8x512xf32, #tpu.memory_space<vmem>>, vector<2x8x512xf32>
    tpu.vector_store %arg3[%c0_4, %c0_5, %c0_6], %4 {strides = array<i32>} : memref<2x8x512xf32, #tpu.memory_space<vmem>>, vector<2x8x512xf32>,
    return
  }
  func.func @transform_0(%arg0: i32) -> (i32, i32, i32) {
    %c0_i32 = arith.constant 0 : i32
    %c0_i32_0 = arith.constant 0 : i32
    %c0_i32_1 = arith.constant 0 : i32
    return %c0_i32, %arg0, %c0_i32_0 : i32, i32, i32
  }
  func.func @transform_1(%arg0: i32) -> (i32, i32) {
    %c0_i32 = arith.constant 0 : i32
    %c0_i32_0 = arith.constant 0 : i32
    return %arg0, %c0_i32 : i32, i32
  }
  func.func @transform_2(%arg0: i32) -> (i32, i32, i32) {
    %c0_i32 = arith.constant 0 : i32
    %c0_i32_0 = arith.constant 0 : i32
    %c0_i32_1 = arith.constant 0 : i32
    return %c0_i32, %arg0, %c0_i32_0 : i32, i32, i32
  }
}

</mosaic_0001>

<llo_original>
// kernel: tpu_custom_call.1
$region0: #{tpu_custom_call.1}
  #allocation0 [shape = 'u32[]', space=smem, size = 0x4, offset = 0x4, fixed_abs, tag = 'smem constant byte address 0x4 - core index']
  #allocation1 [shape = 'u32[144,128]{1,0:T(1,128)}', space=vmem, size = 0x12000, scoped, tag = 'internal scratch']
  %s0 = inlined_call_operand.hbm [shape: f32[2,8,512], index: 0, kind: input, shape index: {}]
  %s1 = inlined_call_operand.hbm [shape: f32[100,512], index: 1, kind: input, shape index: {}]
  %s2 = inlined_call_operand.hbm [shape: f32[2,8,512], index: 2, kind: output, shape index: {}]
  %s3 = sld [smem:[#allocation0]]
  $region26: #{tpu_custom_call.1} parent=0
    _
  %s5 = ssub.s32 1, %s3
  %s6 = scalar_select 0, %s5, %s3
  $region1: #{tpu_custom_call.1} parent=0
    #allocation2 [shape = 'u8[32768]{0}', space=vmem, size = 0x8000, scoped, tag = 'input window, operand 0, single buffered']
    #allocation3 [shape = 's32[1]{0}', space=sflag, size = 0x4, scoped, tag = 'scoped memory for tpu_custom_call.1']
    #allocation4 [shape = 's32[1]{0}', space=sflag, size = 0x4, scoped, tag = 'scoped memory for tpu_custom_call.1']
    #allocation5 [shape = 'u8[16384]{0}', space=vmem, size = 0x4000, scoped, tag = 'input window, operand 1, single buffered']
    #allocation6 [shape = 's32[1]{0}', space=sflag, size = 0x4, scoped, tag = 'scoped memory for tpu_custom_call.1']
    #allocation7 [shape = 'u8[32768]{0}', space=vmem, size = 0x8000, scoped, tag = 'output window, operand 0, single buffered']
    %7 = vsyncpa [#allocation3], 0
    %8 = vsyncpa [#allocation6], 0
    %9 = vsyncpa [#allocation4], 0
    // Predicated region
    $region2: #{tpu_custom_call.1} parent=1 // pred_check
      _
    $region3: #{tpu_custom_call.1} parent=1 // pred_check_branch
      %11 = sbr.rel (0) target = $region5
    $region4: #{tpu_custom_call.1} parent=1 // pred_region
      %s13 = ssub.s32 1024, 1024
      %14 = vsyncadd [#allocation3], %s13
      %s15 = sshll.u32 [#allocation2], 4
      %s16 = int_to_ptr.vmem [resolvable:$true] %s15
      %21 = dma.hbm_to_vmem [thread:$0]  %s0, 1024, %s16, [#allocation3], 512, 512, 32
    $region5: #{tpu_custom_call.1} parent=1 // pred_fallthru
      _
    // Predicated region
    $region6: #{tpu_custom_call.1} parent=1 // pred_check
      _
    $region7: #{tpu_custom_call.1} parent=1 // pred_check_branch
      %23 = sbr.rel (0) target = $region9
    $region8: #{tpu_custom_call.1} parent=1 // pred_region
      %s25 = ssub.s32 512, 512
      %26 = vsyncadd [#allocation6], %s25
      %s28 = sshll.u32 [#allocation5], 4
      %s29 = int_to_ptr.vmem [resolvable:$true] %s28
      %31 = dma.hbm_to_vmem [thread:$0]  %s1, 512, %s29, [#allocation6]
    $region9: #{tpu_custom_call.1} parent=1 // pred_fallthru
      _
    // Predicated region
    $region10: #{tpu_custom_call.1} parent=1 // pred_check
      _
    $region11: #{tpu_custom_call.1} parent=1 // pred_check_branch
      %33 = sbr.rel (0) target = $region13
    $region12: #{tpu_custom_call.1} parent=1 // pred_region
      %34 = dma.done [#allocation3], 1024
    $region13: #{tpu_custom_call.1} parent=1 // pred_fallthru
      _
    // Predicated region
    $region14: #{tpu_custom_call.1} parent=1 // pred_check
      _
    $region15: #{tpu_custom_call.1} parent=1 // pred_check_branch
      %36 = sbr.rel (0) target = $region17
    $region16: #{tpu_custom_call.1} parent=1 // pred_region
      %37 = dma.done [#allocation6], 512
    $region17: #{tpu_custom_call.1} parent=1 // pred_fallthru
      _
    %v38 = vld [vmem:[#allocation2] sm:$0xff]
    %v39 = vld [vmem:[#allocation2 + $0x8] sm:$0xff]
    %v40 = vld [vmem:[#allocation2 + $0x10] sm:$0xff]
    %v41 = vld [vmem:[#allocation2 + $0x18] sm:$0xff]
    %v42 = vld [vmem:[#allocation2 + $0x20] sm:$0xff]
    %v43 = vld [vmem:[#allocation2 + $0x28] sm:$0xff]
    %v44 = vld [vmem:[#allocation2 + $0x30] sm:$0xff]
    %v45 = vld [vmem:[#allocation2 + $0x38] sm:$0xff]
    %v46 = vld [vmem:[#allocation5] sm:$0xff]
    %v47 = vld [vmem:[#allocation5 + $0x8] sm:$0xff]
    %v48 = vld [vmem:[#allocation5 + $0x10] sm:$0xff]
    %v49 = vld [vmem:[#allocation5 + $0x18] sm:$0xff]
    %v50 = vadd.f32 %v38, %v46
    %v51 = vadd.f32 %v39, %v47
    %v52 = vadd.f32 %v40, %v48
    %v53 = vadd.f32 %v41, %v49
    %v54 = vadd.f32 %v42, %v46
    %v55 = vadd.f32 %v43, %v47
    %v56 = vadd.f32 %v44, %v48
    %v57 = vadd.f32 %v45, %v49
    %58 = vst [vmem:[#allocation7] sm:$0xff] %v50
    %59 = vst [vmem:[#allocation7 + $0x8] sm:$0xff] %v51
    %60 = vst [vmem:[#allocation7 + $0x10] sm:$0xff] %v52
    %61 = vst [vmem:[#allocation7 + $0x18] sm:$0xff] %v53
    %62 = vst [vmem:[#allocation7 + $0x20] sm:$0xff] %v54
    %63 = vst [vmem:[#allocation7 + $0x28] sm:$0xff] %v55
    %64 = vst [vmem:[#allocation7 + $0x30] sm:$0xff] %v56
    %65 = vst [vmem:[#allocation7 + $0x38] sm:$0xff] %v57
    // Predicated region
    $region18: #{tpu_custom_call.1} parent=1 // pred_check
      _
    $region19: #{tpu_custom_call.1} parent=1 // pred_check_branch
      %67 = sbr.rel (0) target = $region21
    $region20: #{tpu_custom_call.1} parent=1 // pred_region
      %s69 = ssub.s32 1024, 1024
      %70 = vsyncadd [#allocation4], %s69
      %s71 = sshll.u32 [#allocation7], 4
      %s72 = int_to_ptr.vmem [resolvable:$true] %s71
      %77 = dma.vmem_to_hbm [thread:$0]  %s72, 1024, %s2, [#allocation4], 512, 512, 32
    $region21: #{tpu_custom_call.1} parent=1 // pred_fallthru
      _
    // Predicated region
    $region22: #{tpu_custom_call.1} parent=1 // pred_check
      _
    $region23: #{tpu_custom_call.1} parent=1 // pred_check_branch
      %79 = sbr.rel (0) target = $region25
    $region24: #{tpu_custom_call.1} parent=1 // pred_region
      %80 = dma.done [#allocation4], 1024
    $region25: #{tpu_custom_call.1} parent=1 // pred_fallthru
      _
    %81 = vsyncpa [#allocation3], 1
    %82 = vsyncpa [#allocation6], 1
    %83 = vsyncpa [#allocation4], 1

</llo_original>
